<compile_context>
chip_gen: v7x
topology: tpu7x:2x2x1
jax: 0.10.0
libtpu: 0.0.40
codegen_flags: <defaults>
</compile_context>

<pallas_src>
import functools

import jax
import jax.numpy as jnp
from jax.experimental import pallas as pl
from jax.experimental.pallas import tpu as pltpu


def _round_up(x, m):
    return ((x + m - 1) // m) * m


def _vmem_budget_bytes():
    """Generation-aware VMEM budget, leaving headroom for compiler scratch."""
    try:
        cap = pltpu.get_tpu_info().vmem_capacity_bytes
    except Exception:  # not on TPU at trace time / API shape changed
        cap = 64 * 1024 * 1024
    # ~81% of physical: ~52 MiB on v7x (64 MiB/TC), ~104 MiB on v5e/v6e (128 MiB).
    return int(cap * 13 // 16)


# ----------------------------------------------------------------------------
# Kernels
# ----------------------------------------------------------------------------
def _mlp_kernel_resident(x_ref, w1_ref, b1_ref, w2_ref, b2_ref, out_ref):
    # fc1: bf16 operands on the MXU, f32 accumulation.
    h = jnp.dot(x_ref[...], w1_ref[...], preferred_element_type=jnp.float32)
    # bias + ReLU in f32 on the VPU.
    h = jnp.maximum(h + b1_ref[...], 0.0)
    # fc2: cast the activation to bf16 only at the dot input.
    o = jnp.dot(h.astype(jnp.bfloat16), w2_ref[...],
                preferred_element_type=jnp.float32)
    out_ref[...] = (o + b2_ref[...]).astype(out_ref.dtype)


def _mlp_kernel_htiled(x_ref, w1_ref, b1_ref, w2_ref, b2_ref, out_ref, acc_ref):
    # Grid: (batch tile i, hidden chunk k); k is the innermost reduction axis.
    k = pl.program_id(1)

    @pl.when(k == 0)
    def _():
        acc_ref[...] = jnp.zeros_like(acc_ref)

    h = jnp.dot(x_ref[...], w1_ref[...], preferred_element_type=jnp.float32)
    h = jnp.maximum(h + b1_ref[...], 0.0)
    acc_ref[...] += jnp.dot(h.astype(jnp.bfloat16), w2_ref[...],
                            preferred_element_type=jnp.float32)

    @pl.when(k == pl.num_programs(1) - 1)
    def _():
        out_ref[...] = (acc_ref[...] + b2_ref[...]).astype(out_ref.dtype)


# ----------------------------------------------------------------------------
# Wrappers
# ----------------------------------------------------------------------------
def prepare_mlp_params(w1, b1, w2, b2):
    """One-time prep: transpose PyTorch-layout weights, pad lane dims to 128,
    cast weights to bf16 (biases stay f32)."""
    H, D = w1.shape
    C = w2.shape[0]
    D_p, H_p, C_p = _round_up(D, 128), _round_up(H, 128), _round_up(C, 128)

    w1_p = jnp.zeros((D_p, H_p), jnp.bfloat16).at[:D, :H].set(
        w1.T.astype(jnp.bfloat16))
    b1_p = jnp.zeros((1, H_p), jnp.float32).at[0, :H].set(
        b1.astype(jnp.float32))
    w2_p = jnp.zeros((H_p, C_p), jnp.bfloat16).at[:H, :C].set(
        w2.T.astype(jnp.bfloat16))
    b2_p = jnp.zeros((1, C_p), jnp.float32).at[0, :C].set(
        b2.astype(jnp.float32))
    return (w1_p, b1_p, w2_p, b2_p, D, H, C)


def mlp_forward_prepared(x, params, *, tm_target=256, out_dtype=jnp.float32):
    """Fused fc1 -> ReLU -> fc2 on pre-padded params. x: (B, D) float."""
    w1_p, b1_p, w2_p, b2_p, D, H, C = params
    B = x.shape[0]
    D_p, H_p = w1_p.shape
    C_p = w2_p.shape[1]
    out_isz = jnp.dtype(out_dtype).itemsize

    # Batch tile: multiple of 16 (one bf16 vreg = (16,128)); ensure >= 2 grid
    # steps when possible so DMAs pipeline and both v7x TCs get work.
    TM = _round_up(min(tm_target, _round_up(B, 16)), 16)
    B_p = _round_up(B, TM)
    while B_p // TM < 2 and TM > 16:
        TM = _round_up(TM // 2, 16)
        B_p = _round_up(B, TM)
    n_bt = B_p // TM

    # Pad x only when actually misaligned.
    x_b = x.astype(jnp.bfloat16)
    if (B_p, D_p) != (B, D):
        x_p = jnp.zeros((B_p, D_p), jnp.bfloat16).at[:B, :D].set(x_b)
    else:
        x_p = x_b

    budget = _vmem_budget_bytes()

    # Resident-path footprint (weights single-buffered).
    resident_bytes = ((D_p * H_p + H_p * C_p) * 2      # W1/W2 bf16, 1 buffer
                      + (H_p + C_p) * 4                # biases f32
                      + 2 * TM * D_p * 2               # x tiles, double-buffered
                      + 2 * TM * C_p * out_isz         # out tiles
                      + TM * H_p * 6)                  # h (f32 + bf16 copy)
    use_resident = int(resident_bytes * 5 // 4) <= budget

    flops = 2 * B_p * (D_p * H_p + H_p * C_p)
    bytes_accessed = (B_p * D_p * 2 + (D_p * H_p + H_p * C_p) * 2
                      + (H_p + C_p) * 4 + B_p * C_p * out_isz)
    cost = pl.CostEstimate(flops=flops, transcendentals=0,
                           bytes_accessed=bytes_accessed)

    if use_resident:
        out_p = pl.pallas_call(
            _mlp_kernel_resident,
            out_shape=jax.ShapeDtypeStruct((B_p, C_p), out_dtype),
            grid=(n_bt,),
            in_specs=[
                pl.BlockSpec((TM, D_p), lambda i: (i, 0)),      # batch-tiled x
                pl.BlockSpec((D_p, H_p), lambda i: (0, 0),      # resident W1
                             pipeline_mode=pl.Buffered(1)),
                pl.BlockSpec((1, H_p), lambda i: (0, 0),        # resident b1
                             pipeline_mode=pl.Buffered(1)),
                pl.BlockSpec((H_p, C_p), lambda i: (0, 0),      # resident W2
                             pipeline_mode=pl.Buffered(1)),
                pl.BlockSpec((1, C_p), lambda i: (0, 0),        # resident b2
                             pipeline_mode=pl.Buffered(1)),
            ],
            out_specs=pl.BlockSpec((TM, C_p), lambda i: (i, 0)),
            compiler_params=pltpu.CompilerParams(
                dimension_semantics=("parallel",),
                vmem_limit_bytes=budget),
            cost_estimate=cost,
        )(x_p, w1_p, b1_p, w2_p, b2_p)
    else:
        # H-tiled reduction path for large hidden sizes.
        def tiled_bytes(th):
            return (2 * (D_p * th + th * C_p) * 2      # W1/W2 chunks, dbl-buf
                    + 2 * th * 4 + C_p * 4             # bias chunks + b2
                    + 2 * TM * D_p * 2                 # x tiles
                    + 2 * TM * C_p * out_isz           # out tiles
                    + TM * C_p * 4                     # f32 accumulator
                    + TM * th * 6)                     # h chunk (f32 + bf16)

        n_ht, TH = 1, H_p
        while TH > 128 and int(tiled_bytes(TH) * 5 // 4) > budget:
            n_ht *= 2
            TH = _round_up(pl.cdiv(H_p, n_ht), 128)
        H_pp = TH * n_ht

        if H_pp != H_p:  # re-pad H so the chunk evenly tiles it
            w1_t = jnp.zeros((D_p, H_pp), jnp.bfloat16).at[:, :H_p].set(w1_p)
            b1_t = jnp.zeros((1, H_pp), jnp.float32).at[:, :H_p].set(b1_p)
            w2_t = jnp.zeros((H_pp, C_p), jnp.bfloat16).at[:H_p, :].set(w2_p)
        else:
            w1_t, b1_t, w2_t = w1_p, b1_p, w2_p

        out_p = pl.pallas_call(
            _mlp_kernel_htiled,
            out_shape=jax.ShapeDtypeStruct((B_p, C_p), out_dtype),
            grid=(n_bt, n_ht),
            in_specs=[
                pl.BlockSpec((TM, D_p), lambda i, k: (i, 0)),   # x (reused over k)
                pl.BlockSpec((D_p, TH), lambda i, k: (0, k)),   # W1 H-chunk
                pl.BlockSpec((1, TH), lambda i, k: (0, k)),     # b1 H-chunk
                pl.BlockSpec((TH, C_p), lambda i, k: (k, 0)),   # W2 H-chunk
                pl.BlockSpec((1, C_p), lambda i, k: (0, 0),     # resident b2
                             pipeline_mode=pl.Buffered(1)),
            ],
            out_specs=pl.BlockSpec((TM, C_p), lambda i, k: (i, 0)),
            scratch_shapes=[pltpu.VMEM((TM, C_p), jnp.float32)],
            compiler_params=pltpu.CompilerParams(
                dimension_semantics=("parallel", "arbitrary"),
                vmem_limit_bytes=budget),
            cost_estimate=cost,
        )(x_p, w1_t, b1_t, w2_t, b2_p)

    if (B_p, C_p) != (B, C):
        out_p = out_p[:B, :C]
    return out_p


@functools.partial(jax.jit, static_argnames=("tm_target",))
def mlp_forward(x, w1, b1, w2, b2, *, tm_target=256):
    """fc1 -> ReLU -> fc2 with PyTorch nn.Linear-layout weights.

    x:  (B, D_in) float
    w1: (H, D_in), b1: (H,)
    w2: (C, H),   b2: (C,)
    returns (B, C) float32
    """
    params = prepare_mlp_params(w1, b1, w2, b2)
    return mlp_forward_prepared(x, params, tm_target=tm_target)


def init_linear_params(key, in_features, out_features):
    """nn.Linear-style init: uniform(+/- 1/sqrt(fan_in)), PyTorch layout."""
    k_w, k_b = jax.random.split(key)
    bound = 1.0 / jnp.sqrt(in_features)
    w = jax.random.uniform(
        k_w, (out_features, in_features), jnp.float32, -bound, bound)
    b = jax.random.uniform(k_b, (out_features,), jnp.float32, -bound, bound)
    return w, b


if __name__ == "__main__":
    # Small shapes consistent with the module's forward.
    batch, input_size, hidden_size, num_classes = 8, 32, 64, 16

    key = jax.random.PRNGKey(0)
    k_x, k_fc1, k_fc2 = jax.random.split(key, 3)

    x = jax.random.normal(k_x, (batch, input_size), jnp.float32)
    w1, b1 = init_linear_params(k_fc1, input_size, hidden_size)
    w2, b2 = init_linear_params(k_fc2, hidden_size, num_classes)

    out = jax.block_until_ready(mlp_forward(x, w1, b1, w2, b2))

    # Pure-JAX reference with matching precision (bf16 MXU operands, f32 acc).
    xb = x.astype(jnp.bfloat16).astype(jnp.float32)
    w1b = w1.astype(jnp.bfloat16).astype(jnp.float32)
    w2b = w2.astype(jnp.bfloat16).astype(jnp.float32)
    h_ref = jnp.maximum(xb @ w1b.T + b1, 0.0)
    ref = h_ref.astype(jnp.bfloat16).astype(jnp.float32) @ w2b.T + b2

    assert out.shape == (batch, num_classes)
    assert jnp.allclose(out, ref, atol=2e-2, rtol=2e-2), float(
        jnp.max(jnp.abs(out - ref)))

    print("KERNEL_OK")
</pallas_src>

<mosaic_0001>
module attributes {stable_mosaic.version = 11 : i64} {
  func.func @_mlp_kernel_resident(%arg0: i32, %arg1: memref<16x128xbf16, #tpu.memory_space<vmem>>, %arg2: memref<128x128xbf16, #tpu.memory_space<vmem>>, %arg3: memref<1x128xf32, #tpu.memory_space<vmem>>, %arg4: memref<128x128xbf16, #tpu.memory_space<vmem>>, %arg5: memref<1x128xf32, #tpu.memory_space<vmem>>, %arg6: memref<16x128xf32, #tpu.memory_space<vmem>>) attributes {dimension_semantics = [#tpu.dimension_semantics<parallel>], iteration_bounds = array<i64: 1>, scalar_prefetch = 0 : i64, scratch_operands = 0 : i64, tpu.core_type = #tpu.core_type<tc>, window_params = [{transform_indices = @transform_0, window_bounds = array<i64: 16, 128>}, {pipeline_mode = #tpu.pipeline_mode<synchronous>, transform_indices = @transform_1, window_bounds = array<i64: 128, 128>}, {pipeline_mode = #tpu.pipeline_mode<synchronous>, transform_indices = @transform_2, window_bounds = array<i64: 1, 128>}, {pipeline_mode = #tpu.pipeline_mode<synchronous>, transform_indices = @transform_3, window_bounds = array<i64: 128, 128>}, {pipeline_mode = #tpu.pipeline_mode<synchronous>, transform_indices = @transform_4, window_bounds = array<i64: 1, 128>}, {transform_indices = @transform_5, window_bounds = array<i64: 16, 128>}]} {
    %c0 = arith.constant 0 : index
    %c0_0 = arith.constant 0 : index
    %0 = vector.load %arg1[%c0, %c0_0] : memref<16x128xbf16, #tpu.memory_space<vmem>>, vector<16x128xbf16>
    %c0_1 = arith.constant 0 : index
    %c0_2 = arith.constant 0 : index
    %1 = vector.load %arg2[%c0_1, %c0_2] : memref<128x128xbf16, #tpu.memory_space<vmem>>, vector<128x128xbf16>
    %cst = arith.constant dense<0.000000e+00> : vector<16x128xf32>
    %2 = tpu.matmul %0, %1, %cst {dimension_numbers = #tpu.dot_dimension_numbers<[1], [0], [0], [1], [0, 0, 1, 1], [], []>} : vector<16x128xbf16>, vector<128x128xbf16>, vector<16x128xf32> -> vector<16x128xf32>
    %c0_3 = arith.constant 0 : index
    %c0_4 = arith.constant 0 : index
    %3 = vector.load %arg3[%c0_3, %c0_4] : memref<1x128xf32, #tpu.memory_space<vmem>>, vector<1x128xf32>
    %4 = vector.broadcast %3 : vector<1x128xf32> to vector<16x128xf32>
    %5 = arith.addf %2, %4 : vector<16x128xf32>
    %cst_5 = arith.constant 0.000000e+00 : f32
    %6 = vector.broadcast %cst_5 : f32 to vector<16x128xf32>
    %7 = arith.maximumf %5, %6 : vector<16x128xf32>
    %8 = arith.truncf %7 : vector<16x128xf32> to vector<16x128xbf16>
    %c0_6 = arith.constant 0 : index
    %c0_7 = arith.constant 0 : index
    %9 = vector.load %arg4[%c0_6, %c0_7] : memref<128x128xbf16, #tpu.memory_space<vmem>>, vector<128x128xbf16>
    %cst_8 = arith.constant dense<0.000000e+00> : vector<16x128xf32>
    %10 = tpu.matmul %8, %9, %cst_8 {dimension_numbers = #tpu.dot_dimension_numbers<[1], [0], [0], [1], [0, 0, 1, 1], [], []>} : vector<16x128xbf16>, vector<128x128xbf16>, vector<16x128xf32> -> vector<16x128xf32>
    %c0_9 = arith.constant 0 : index
    %c0_10 = arith.constant 0 : index
    %11 = vector.load %arg5[%c0_9, %c0_10] : memref<1x128xf32, #tpu.memory_space<vmem>>, vector<1x128xf32>
    %12 = vector.broadcast %11 : vector<1x128xf32> to vector<16x128xf32>
    %13 = arith.addf %10, %12 : vector<16x128xf32>
    %c0_11 = arith.constant 0 : index
    %c0_12 = arith.constant 0 : index
    %14 = vector.load %arg6[%c0_11, %c0_12] : memref<16x128xf32, #tpu.memory_space<vmem>>, vector<16x128xf32>
    tpu.vector_store %arg6[%c0_11, %c0_12], %13 {strides = array<i32>} : memref<16x128xf32, #tpu.memory_space<vmem>>, vector<16x128xf32>,
    return
  }
  func.func @transform_0(%arg0: i32) -> (i32, i32) {
    %c0_i32 = arith.constant 0 : i32
    %c0_i32_0 = arith.constant 0 : i32
    return %arg0, %c0_i32 : i32, i32
  }
  func.func @transform_1(%arg0: i32) -> (i32, i32) {
    %c0_i32 = arith.constant 0 : i32
    %c0_i32_0 = arith.constant 0 : i32
    %c0_i32_1 = arith.constant 0 : i32
    return %c0_i32, %c0_i32_0 : i32, i32
  }
  func.func @transform_2(%arg0: i32) -> (i32, i32) {
    %c0_i32 = arith.constant 0 : i32
    %c0_i32_0 = arith.constant 0 : i32
    %c0_i32_1 = arith.constant 0 : i32
    return %c0_i32, %c0_i32_0 : i32, i32
  }
  func.func @transform_3(%arg0: i32) -> (i32, i32) {
    %c0_i32 = arith.constant 0 : i32
    %c0_i32_0 = arith.constant 0 : i32
    %c0_i32_1 = arith.constant 0 : i32
    return %c0_i32, %c0_i32_0 : i32, i32
  }
  func.func @transform_4(%arg0: i32) -> (i32, i32) {
    %c0_i32 = arith.constant 0 : i32
    %c0_i32_0 = arith.constant 0 : i32
    %c0_i32_1 = arith.constant 0 : i32
    return %c0_i32, %c0_i32_0 : i32, i32
  }
  func.func @transform_5(%arg0: i32) -> (i32, i32) {
    %c0_i32 = arith.constant 0 : i32
    %c0_i32_0 = arith.constant 0 : i32
    return %arg0, %c0_i32 : i32, i32
  }
}

</mosaic_0001>

<llo_original>
// kernel: mlp_forward.1
$region0: #{mlp_forward.1}
  #allocation0 [shape = 'u32[]', space=smem, size = 0x4, offset = 0x4, fixed_abs, tag = 'smem constant byte address 0x4 - core index']
  #allocation1 [shape = 'u32[144,128]{1,0:T(1,128)}', space=vmem, size = 0x12000, scoped, tag = 'internal scratch']
  %s0 = inlined_call_operand.vmem [shape: bf16[16,128], index: 0, kind: input, shape index: {}]
  %s1 = inlined_call_operand.vmem [shape: bf16[128,128], index: 1, kind: input, shape index: {}]
  %s2 = inlined_call_operand.vmem [shape: f32[1,128], index: 2, kind: input, shape index: {}]
  %s3 = inlined_call_operand.vmem [shape: bf16[128,128], index: 3, kind: input, shape index: {}]
  %s4 = inlined_call_operand.vmem [shape: f32[1,128], index: 4, kind: input, shape index: {}]
  %s5 = inlined_call_operand.vmem [shape: f32[16,128], index: 5, kind: output, shape index: {}]
  %s6 = sld [smem:[#allocation0]]
  $region30: #{mlp_forward.1} parent=0
    _
  %s8 = ssub.s32 1, %s6
  %s9 = scalar_select 0, %s8, %s6
  // Predicated region
  $region2: #{mlp_forward.1} parent=0 // pred_check
    _
  $region3: #{mlp_forward.1} parent=0 // pred_check_branch
    %11 = sbr.rel (0) target = $region5
  $region4: #{mlp_forward.1} parent=0 // pred_region
    _
  $region5: #{mlp_forward.1} parent=0 // pred_fallthru
    _
  // Predicated region
  $region6: #{mlp_forward.1} parent=0 // pred_check
    _
  $region7: #{mlp_forward.1} parent=0 // pred_check_branch
    %13 = sbr.rel (0) target = $region9
  $region8: #{mlp_forward.1} parent=0 // pred_region
    _
  $region9: #{mlp_forward.1} parent=0 // pred_fallthru
    _
  // Predicated region
  $region10: #{mlp_forward.1} parent=0 // pred_check
    _
  $region11: #{mlp_forward.1} parent=0 // pred_check_branch
    %15 = sbr.rel (0) target = $region13
  $region12: #{mlp_forward.1} parent=0 // pred_region
    _
  $region13: #{mlp_forward.1} parent=0 // pred_fallthru
    _
  // Predicated region
  $region14: #{mlp_forward.1} parent=0 // pred_check
    _
  $region15: #{mlp_forward.1} parent=0 // pred_check_branch
    %17 = sbr.rel (0) target = $region17
  $region16: #{mlp_forward.1} parent=0 // pred_region
    _
  $region17: #{mlp_forward.1} parent=0 // pred_fallthru
    _
  // Predicated region
  $region18: #{mlp_forward.1} parent=0 // pred_check
    _
  $region19: #{mlp_forward.1} parent=0 // pred_check_branch
    %19 = sbr.rel (0) target = $region21
  $region20: #{mlp_forward.1} parent=0 // pred_region
    _
  $region21: #{mlp_forward.1} parent=0 // pred_fallthru
    _
  %v21 = vld [vmem:[%s0] sm:$0xf]
  %v22 = vld [vmem:[%s0 + $0x4] sm:$0xf]
  %v23 = vld [vmem:[%s1] sm:$0xf]
  %v24 = vld [vmem:[%s1 + $0x4] sm:$0xf]
  %v25 = vld [vmem:[%s1 + $0x8] sm:$0xf]
  %v26 = vld [vmem:[%s1 + $0xc] sm:$0xf]
  %v27 = vld [vmem:[%s1 + $0x10] sm:$0xf]
  %v28 = vld [vmem:[%s1 + $0x14] sm:$0xf]
  %v29 = vld [vmem:[%s1 + $0x18] sm:$0xf]
  %v30 = vld [vmem:[%s1 + $0x1c] sm:$0xf]
  %v31 = vld [vmem:[%s1 + $0x20] sm:$0xf]
  %v32 = vld [vmem:[%s1 + $0x24] sm:$0xf]
  %v33 = vld [vmem:[%s1 + $0x28] sm:$0xf]
  %v34 = vld [vmem:[%s1 + $0x2c] sm:$0xf]
  %v35 = vld [vmem:[%s1 + $0x30] sm:$0xf]
  %v36 = vld [vmem:[%s1 + $0x34] sm:$0xf]
  %v37 = vld [vmem:[%s1 + $0x38] sm:$0xf]
  %v38 = vld [vmem:[%s1 + $0x3c] sm:$0xf]
  %v39 = vld [vmem:[%s2] sm:$0x1]
  %v41 = vlaneseq
  %v42 = vshrl.u32 %v41, 7
  %v43 = vsub.s32 0, %v42
  %v44 = vrot.slane %v39, %v43
  %v48 = vunpack.c.l.b16 %v21
  %v49 = vunpack.c.l.b16 %v22
  %v50 = vpack.c.b16 %v49, %v48
  %v68 = vunpack.c.l.b16 %v23
  %v69 = vunpack.c.l.b16 %v24
  %v70 = vunpack.c.l.b16 %v25
  %v71 = vunpack.c.l.b16 %v26
  %v72 = vunpack.c.l.b16 %v27
  %v73 = vunpack.c.l.b16 %v28
  %v74 = vunpack.c.l.b16 %v29
  %v75 = vunpack.c.l.b16 %v30
  %v76 = vunpack.c.l.b16 %v31
  %v77 = vunpack.c.l.b16 %v32
  %v78 = vunpack.c.l.b16 %v33
  %v79 = vunpack.c.l.b16 %v34
  %v80 = vunpack.c.l.b16 %v35
  %v81 = vunpack.c.l.b16 %v36
  %v82 = vunpack.c.l.b16 %v37
  %v83 = vunpack.c.l.b16 %v38
  %v84 = vpack.c.b16 %v69, %v68
  %v85 = vpack.c.b16 %v71, %v70
  %v86 = vpack.c.b16 %v73, %v72
  %v87 = vpack.c.b16 %v75, %v74
  %v88 = vpack.c.b16 %v77, %v76
  %v89 = vpack.c.b16 %v79, %v78
  %v90 = vpack.c.b16 %v81, %v80
  %v91 = vpack.c.b16 %v83, %v82
  %100 = vmatprep.subr.bf16.mxu0 0
  %101 = vmatpush1.bf16.msra.mxu0 %v84
  %102 = vmatprep.subr.bf16.mxu0 0
  %103 = vmatpush1.bf16.msra.mxu0 %v85
  %104 = vmatprep.subr.bf16.mxu0 0
  %105 = vmatpush1.bf16.msra.mxu0 %v86
  %106 = vmatprep.subr.bf16.mxu0 0
  %107 = vmatpush1.bf16.msra.mxu0 %v87
  %108 = vmatprep.subr.bf16.mxu0 0
  %109 = vmatpush1.bf16.msra.mxu0 %v88
  %110 = vmatprep.subr.bf16.mxu0 0
  %111 = vmatpush1.bf16.msra.mxu0 %v89
  %112 = vmatprep.subr.bf16.mxu0 0
  %113 = vmatpush1.bf16.msra.mxu0 %v90
  %114 = vmatprep.subr.bf16.mxu0 0
  %115 = vmatpush1.bf16.msra.mxu0 %v91
  %116 = vmatprep.subr.bf16.mxu0 0
  %117 = vmatpush1.bf16.msra.mxu0 0
  %118 = vmatprep.subr.bf16.mxu0 0
  %119 = vmatpush1.bf16.msra.mxu0 0
  %120 = vmatprep.subr.bf16.mxu0 0
  %121 = vmatpush1.bf16.msra.mxu0 0
  %122 = vmatprep.subr.bf16.mxu0 0
  %123 = vmatpush1.bf16.msra.mxu0 0
  %124 = vmatprep.subr.bf16.mxu0 0
  %125 = vmatpush1.bf16.msra.mxu0 0
  %126 = vmatprep.subr.bf16.mxu0 0
  %127 = vmatpush1.bf16.msra.mxu0 0
  %128 = vmatprep.subr.bf16.mxu0 0
  %129 = vmatpush1.bf16.msra.mxu0 0
  %130 = vmatprep.subr.bf16.mxu0 0
  %131 = vmatpush1.bf16.msra.mxu0 0
  %132 = vmatprep.mubr.bf16.mxu0 0
  %133 = vmatmul.mubr.bf16.gmra.mrb[0].mxu0 %v50
  %v134 = vpop.f32.mrb[0].mxu0
  %v135 = vadd.f32 %v44, %v134
  %v136 = vpop.f32.mrb[0].mxu0
  %v137 = vpop.f32.mrb[0].mxu0
  %v138 = vadd.f32 %v44, %v137
  %v139 = vpop.f32.mrb[0].mxu0
  %140 = vdwg.mxu0
  %v141 = vmax.f32 %v135, 0.0
  %v142 = vmax.f32 %v138, 0.0
  %v143 = vpack.c.bf16 %v142, %v141
  %v144 = vld [vmem:[%s3] sm:$0xf]
  %v145 = vld [vmem:[%s3 + $0x4] sm:$0xf]
  %v146 = vld [vmem:[%s3 + $0x8] sm:$0xf]
  %v147 = vld [vmem:[%s3 + $0xc] sm:$0xf]
  %v148 = vld [vmem:[%s3 + $0x10] sm:$0xf]
  %v149 = vld [vmem:[%s3 + $0x14] sm:$0xf]
  %v150 = vld [vmem:[%s3 + $0x18] sm:$0xf]
  %v151 = vld [vmem:[%s3 + $0x1c] sm:$0xf]
  %v152 = vld [vmem:[%s3 + $0x20] sm:$0xf]
  %v153 = vld [vmem:[%s3 + $0x24] sm:$0xf]
  %v154 = vld [vmem:[%s3 + $0x28] sm:$0xf]
  %v155 = vld [vmem:[%s3 + $0x2c] sm:$0xf]
  %v156 = vld [vmem:[%s3 + $0x30] sm:$0xf]
  %v157 = vld [vmem:[%s3 + $0x34] sm:$0xf]
  %v158 = vld [vmem:[%s3 + $0x38] sm:$0xf]
  %v159 = vld [vmem:[%s3 + $0x3c] sm:$0xf]
  %v160 = vld [vmem:[%s4] sm:$0x1]
  %v162 = vlaneseq
  %v163 = vshrl.u32 %v162, 7
  %v164 = vsub.s32 0, %v163
  %v165 = vrot.slane %v160, %v164
  %v183 = vunpack.c.l.b16 %v144
  %v184 = vunpack.c.l.b16 %v145
  %v185 = vunpack.c.l.b16 %v146
  %v186 = vunpack.c.l.b16 %v147
  %v187 = vunpack.c.l.b16 %v148
  %v188 = vunpack.c.l.b16 %v149
  %v189 = vunpack.c.l.b16 %v150
  %v190 = vunpack.c.l.b16 %v151
  %v191 = vunpack.c.l.b16 %v152
  %v192 = vunpack.c.l.b16 %v153
  %v193 = vunpack.c.l.b16 %v154
  %v194 = vunpack.c.l.b16 %v155
  %v195 = vunpack.c.l.b16 %v156
  %v196 = vunpack.c.l.b16 %v157
  %v197 = vunpack.c.l.b16 %v158
  %v198 = vunpack.c.l.b16 %v159
  %v199 = vpack.c.b16 %v184, %v183
  %v200 = vpack.c.b16 %v186, %v185
  %v201 = vpack.c.b16 %v188, %v187
  %v202 = vpack.c.b16 %v190, %v189
  %v203 = vpack.c.b16 %v192, %v191
  %v204 = vpack.c.b16 %v194, %v193
  %v205 = vpack.c.b16 %v196, %v195
  %v206 = vpack.c.b16 %v198, %v197
  %215 = vmatprep.subr.bf16.mxu0 0
  %216 = vmatpush1.bf16.msra.mxu0 %v199
  %217 = vmatprep.subr.bf16.mxu0 0
  %218 = vmatpush1.bf16.msra.mxu0 %v200
  %219 = vmatprep.subr.bf16.mxu0 0
  %220 = vmatpush1.bf16.msra.mxu0 %v201
  %221 = vmatprep.subr.bf16.mxu0 0
  %222 = vmatpush1.bf16.msra.mxu0 %v202
  %223 = vmatprep.subr.bf16.mxu0 0
  %224 = vmatpush1.bf16.msra.mxu0 %v203
  %225 = vmatprep.subr.bf16.mxu0 0
  %226 = vmatpush1.bf16.msra.mxu0 %v204
  %227 = vmatprep.subr.bf16.mxu0 0
  %228 = vmatpush1.bf16.msra.mxu0 %v205
  %229 = vmatprep.subr.bf16.mxu0 0
  %230 = vmatpush1.bf16.msra.mxu0 %v206
  %231 = vmatprep.subr.bf16.mxu0 0
  %232 = vmatpush1.bf16.msra.mxu0 0
  %233 = vmatprep.subr.bf16.mxu0 0
  %234 = vmatpush1.bf16.msra.mxu0 0
  %235 = vmatprep.subr.bf16.mxu0 0
  %236 = vmatpush1.bf16.msra.mxu0 0
  %237 = vmatprep.subr.bf16.mxu0 0
  %238 = vmatpush1.bf16.msra.mxu0 0
  %239 = vmatprep.subr.bf16.mxu0 0
  %240 = vmatpush1.bf16.msra.mxu0 0
  %241 = vmatprep.subr.bf16.mxu0 0
  %242 = vmatpush1.bf16.msra.mxu0 0
  %243 = vmatprep.subr.bf16.mxu0 0
  %244 = vmatpush1.bf16.msra.mxu0 0
  %245 = vmatprep.subr.bf16.mxu0 0
  %246 = vmatpush1.bf16.msra.mxu0 0
  %247 = vmatprep.mubr.bf16.mxu0 0
  %248 = vmatmul.mubr.bf16.gmra.mrb[0].mxu0 %v143
  %v249 = vpop.f32.mrb[0].mxu0
  %v250 = vadd.f32 %v165, %v249
  %v251 = vpop.f32.mrb[0].mxu0
  %v252 = vpop.f32.mrb[0].mxu0
  %v253 = vadd.f32 %v165, %v252
  %v254 = vpop.f32.mrb[0].mxu0
  %255 = vdwg.mxu0
  %256 = vst [vmem:[%s5] sm:$0xff] %v250
  %257 = vst [vmem:[%s5 + $0x8] sm:$0xff] %v253
  // Predicated region
  $region22: #{mlp_forward.1} parent=0 // pred_check
    _
  $region23: #{mlp_forward.1} parent=0 // pred_check_branch
    %259 = sbr.rel (0) target = $region25
  $region24: #{mlp_forward.1} parent=0 // pred_region
    _
  $region25: #{mlp_forward.1} parent=0 // pred_fallthru
    _
  // Predicated region
  $region26: #{mlp_forward.1} parent=0 // pred_check
    _
  $region27: #{mlp_forward.1} parent=0 // pred_check_branch
    %261 = sbr.rel (0) target = $region29
  $region28: #{mlp_forward.1} parent=0 // pred_region
    _
  $region29: #{mlp_forward.1} parent=0 // pred_fallthru
    _

</llo_original>
